<compile_context>
chip_gen: v5e
topology: v5e:2x2
jax: 0.10.0
libtpu: 0.0.40
codegen_flags: <defaults>
</compile_context>

<pallas_src>
import jax
import jax.numpy as jnp
from jax.experimental import pallas as pl
from jax.experimental.pallas import tpu as pltpu

_LANE = 128
_SUBLANE = 8


def _round_up(x, m):
    return ((x + m - 1) // m) * m


def _vmem_usable_bytes():
    """Per-generation usable VMEM ceiling (headroom left for compiler scratch)."""
    try:
        cap = int(pltpu.get_tpu_info().vmem_capacity_bytes)
    except Exception:
        cap = 64 * 1024 * 1024  # conservative fallback = smallest (v7x) physical VMEM
    return (cap * 13) // 16  # ~81%: ~52 MiB on v7x, ~104 MiB on v5e/v6e


def _choose_tiling(batch, dp):
    """Pick (tm, padded_batch, grid_steps) for the streamed batch axis."""
    full = _round_up(max(batch, 1), _SUBLANE)
    # tm needed for >= ~2 MiB of streamed x+out f32 traffic per grid step.
    target_tm = (2 * 1024 * 1024) // (8 * dp)
    # Keep x/out double buffers (2 arrays * 2 bufs * tm * dp * 4 B) <= ~16 MiB.
    cap_tm = (16 * 1024 * 1024) // (16 * dp)
    tm = max(_SUBLANE, min(1024, target_tm, cap_tm))
    tm = _round_up(min(tm, full), _SUBLANE)
    if tm >= full:
        return full, full, 1
    grid = -(-full // tm)
    # v7x megacore: batch axis is "parallel" -> prefer an even number of steps.
    if grid >= 3 and grid % 2 == 1:
        grid += 1
        tm = _round_up(-(-full // grid), _SUBLANE)
        grid = -(-full // tm)
    return tm, tm * grid, grid


def _node_odefunc_kernel(x_ref, w_ref, b_ref, o_ref):
    # x_ref: (tm, dp) f32   w_ref: (dp, dp) in (in, out) layout (f32 or bf16)
    # b_ref: (1, dp) f32    o_ref: (tm, dp) f32
    x = x_ref[...].astype(w_ref.dtype)
    y = jnp.dot(x, w_ref[...], preferred_element_type=jnp.float32)
    y = y + b_ref[...]                       # f32 bias broadcast
    o_ref[...] = jnp.tanh(y).astype(o_ref.dtype)


def prepare_params(weight, bias, use_bf16=False):
    """One-time (per ODE solve) parameter prep: lane-pad + transpose.

    weight: (input_size, input_size) in PyTorch (out, in) layout.
    Returns (w_t_padded, bias_padded) with w_t_padded in (in_p, out_p) layout so
    the kernel's contraction needs no per-tile transpose, and bias as (1, dp).
    """
    d = weight.shape[0]
    dp = _round_up(d, _LANE)
    w = jnp.asarray(weight, jnp.float32)
    b = jnp.asarray(bias, jnp.float32)
    if dp != d:
        w = jnp.pad(w, ((0, dp - d), (0, dp - d)))
        b = jnp.pad(b, (0, dp - d))
    w_t = w.T  # (in, out): x @ w_t == x @ W.T
    if use_bf16:
        w_t = w_t.astype(jnp.bfloat16)
    return w_t, b.reshape(1, dp)


@jax.jit
def node_odefunc_forward_prepared(t, x, w_t_padded, b_padded):
    """forward(t, x) with pre-padded / pre-transposed params (see prepare_params)."""
    del t  # the ODE function does not use t
    batch, d = x.shape
    dp = w_t_padded.shape[0]
    tm, bp, grid = _choose_tiling(batch, dp)

    if bp != batch or dp != d:
        x_p = jnp.pad(x, ((0, bp - batch), (0, dp - d)))
    else:
        x_p = x

    w_elem = jnp.dtype(w_t_padded.dtype).itemsize
    # Honest VMEM footprint: every block is double-buffered by default.
    need_bytes = (2 * dp * dp * w_elem        # resident weight (2 buffers)
                  + 2 * dp * 4                # bias (2 buffers)
                  + 2 * 2 * tm * dp * 4)      # x + out tiles, double-buffered
    usable = _vmem_usable_bytes()

    cp_kwargs = dict(dimension_semantics=("parallel",))
    # v5e's scoped default is only 16 MiB; raise the limit whenever we get close.
    if need_bytes > 12 * 1024 * 1024:
        cp_kwargs["vmem_limit_bytes"] = int(min(need_bytes * 5 // 4 + (2 << 20), usable))

    cost = pl.CostEstimate(
        flops=2 * bp * dp * dp,
        transcendentals=bp * dp,
        bytes_accessed=2 * bp * dp * 4 + dp * dp * w_elem + dp * 4,
    )

    out_p = pl.pallas_call(
        _node_odefunc_kernel,
        out_shape=jax.ShapeDtypeStruct((bp, dp), x.dtype),
        grid=(grid,),
        in_specs=[
            pl.BlockSpec((tm, dp), lambda i: (i, 0)),   # x: streamed batch tiles
            pl.BlockSpec((dp, dp), lambda i: (0, 0)),   # W^T: VMEM resident
            pl.BlockSpec((1, dp), lambda i: (0, 0)),    # bias: VMEM resident
        ],
        out_specs=pl.BlockSpec((tm, dp), lambda i: (i, 0)),
        compiler_params=pltpu.CompilerParams(**cp_kwargs),
        cost_estimate=cost,
    )(x_p, w_t_padded, b_padded)

    if bp != batch or dp != d:
        out_p = out_p[:batch, :d]
    return out_p


def node_odefunc_forward(t, x, weight, bias):
    """Convenience wrapper taking raw PyTorch-layout (out, in) weight and bias."""
    w_t, b = prepare_params(weight, bias)
    return node_odefunc_forward_prepared(t, x, w_t, b)


def _reference(t, x, weight, bias):
    # Pure-JAX reference mirroring torch.nn.Linear + tanh
    return jnp.tanh(x @ weight.T + bias)


if __name__ == "__main__":
    key = jax.random.PRNGKey(0)
    k_x, k_w, k_b = jax.random.split(key, 3)

    batch = 8
    input_size = 32

    # Deterministic synthetic params (PyTorch Linear shapes: W=(out, in), b=(out,))
    x = jax.random.normal(k_x, (batch, input_size), dtype=jnp.float32)
    weight = jax.random.normal(k_w, (input_size, input_size), dtype=jnp.float32) * 0.1
    bias = jax.random.normal(k_b, (input_size,), dtype=jnp.float32) * 0.1
    t = jnp.float32(0.0)

    # Hoist the one-time weight pad + transpose out of the per-evaluation path.
    w_t_p, b_p = prepare_params(weight, bias)

    out = node_odefunc_forward_prepared(t, x, w_t_p, b_p)
    out = jax.block_until_ready(out)

    ref = _reference(t, x, weight, bias)
    assert out.shape == (batch, input_size)
    assert jnp.allclose(out, ref, atol=1e-5, rtol=1e-5), "mismatch vs reference"

    print("KERNEL_OK")
</pallas_src>

<mosaic_0001>
module attributes {stable_mosaic.version = 11 : i64} {
  func.func @_node_odefunc_kernel(%arg0: i32, %arg1: memref<8x128xf32, #tpu.memory_space<vmem>>, %arg2: memref<128x128xf32, #tpu.memory_space<vmem>>, %arg3: memref<1x128xf32, #tpu.memory_space<vmem>>, %arg4: memref<8x128xf32, #tpu.memory_space<vmem>>) attributes {dimension_semantics = [#tpu.dimension_semantics<parallel>], iteration_bounds = array<i64: 1>, scalar_prefetch = 0 : i64, scratch_operands = 0 : i64, tpu.core_type = #tpu.core_type<tc>, window_params = [{transform_indices = @transform_0, window_bounds = array<i64: 8, 128>}, {pipeline_mode = #tpu.pipeline_mode<synchronous>, transform_indices = @transform_1, window_bounds = array<i64: 128, 128>}, {pipeline_mode = #tpu.pipeline_mode<synchronous>, transform_indices = @transform_2, window_bounds = array<i64: 1, 128>}, {transform_indices = @transform_3, window_bounds = array<i64: 8, 128>}]} {
    %c0 = arith.constant 0 : index
    %c0_0 = arith.constant 0 : index
    %0 = vector.load %arg1[%c0, %c0_0] : memref<8x128xf32, #tpu.memory_space<vmem>>, vector<8x128xf32>
    %c0_1 = arith.constant 0 : index
    %c0_2 = arith.constant 0 : index
    %1 = vector.load %arg2[%c0_1, %c0_2] : memref<128x128xf32, #tpu.memory_space<vmem>>, vector<128x128xf32>
    %cst = arith.constant dense<0.000000e+00> : vector<8x128xf32>
    %2 = tpu.matmul %0, %1, %cst {dimension_numbers = #tpu.dot_dimension_numbers<[1], [0], [0], [1], [0, 0, 1, 1], [], []>} : vector<8x128xf32>, vector<128x128xf32>, vector<8x128xf32> -> vector<8x128xf32>
    %c0_3 = arith.constant 0 : index
    %c0_4 = arith.constant 0 : index
    %3 = vector.load %arg3[%c0_3, %c0_4] : memref<1x128xf32, #tpu.memory_space<vmem>>, vector<1x128xf32>
    %4 = vector.broadcast %3 : vector<1x128xf32> to vector<8x128xf32>
    %5 = arith.addf %2, %4 : vector<8x128xf32>
    %6 = math.tanh %5 : vector<8x128xf32>
    %c0_5 = arith.constant 0 : index
    %c0_6 = arith.constant 0 : index
    %7 = vector.load %arg4[%c0_5, %c0_6] : memref<8x128xf32, #tpu.memory_space<vmem>>, vector<8x128xf32>
    tpu.vector_store %arg4[%c0_5, %c0_6], %6 {strides = array<i32>} : memref<8x128xf32, #tpu.memory_space<vmem>>, vector<8x128xf32>,
    return
  }
  func.func @transform_0(%arg0: i32) -> (i32, i32) {
    %c0_i32 = arith.constant 0 : i32
    %c0_i32_0 = arith.constant 0 : i32
    return %arg0, %c0_i32 : i32, i32
  }
  func.func @transform_1(%arg0: i32) -> (i32, i32) {
    %c0_i32 = arith.constant 0 : i32
    %c0_i32_0 = arith.constant 0 : i32
    %c0_i32_1 = arith.constant 0 : i32
    return %c0_i32, %c0_i32_0 : i32, i32
  }
  func.func @transform_2(%arg0: i32) -> (i32, i32) {
    %c0_i32 = arith.constant 0 : i32
    %c0_i32_0 = arith.constant 0 : i32
    %c0_i32_1 = arith.constant 0 : i32
    return %c0_i32, %c0_i32_0 : i32, i32
  }
  func.func @transform_3(%arg0: i32) -> (i32, i32) {
    %c0_i32 = arith.constant 0 : i32
    %c0_i32_0 = arith.constant 0 : i32
    return %arg0, %c0_i32 : i32, i32
  }
}

</mosaic_0001>

<llo_original>
// kernel: node_odefunc_forward_prepared.1
$region0: #{node_odefunc_forward_prepared.1}
  #allocation0 [shape = 'u32[]', space=smem, size = 0x4, offset = 0x4, fixed_abs, tag = 'smem constant byte address 0x4 - core index']
  #allocation1 [shape = 'u32[72,128]{1,0:T(1,128)}', space=vmem, size = 0x9000, scoped, tag = 'internal scratch']
  %s0 = inlined_call_operand.vmem [shape: f32[8,128], index: 0, kind: input, shape index: {}]
  %s1 = inlined_call_operand.hbm [shape: f32[128,128], index: 1, kind: input, shape index: {}]
  %s2 = inlined_call_operand.vmem [shape: f32[1,128], index: 2, kind: input, shape index: {}]
  %s3 = inlined_call_operand.hbm [shape: f32[8,128], index: 3, kind: output, shape index: {}]
  %s4 = sld [smem:[#allocation0]]
  $region26: #{node_odefunc_forward_prepared.1} parent=0
    _
  %s6 = ssub.s32 1, %s4
  %s7 = scalar_select 0, %s6, %s4
  $region1: #{node_odefunc_forward_prepared.1} parent=0
    #allocation2 [shape = 'u8[65536]{0}', space=vmem, size = 0x10000, scoped, tag = 'input window, operand 1, single buffered']
    #allocation3 [shape = 's32[1]{0}', space=sflag, size = 0x4, scoped, tag = 'scoped memory for node_odefunc_forward_prepared.1']
    #allocation4 [shape = 's32[1]{0}', space=sflag, size = 0x4, scoped, tag = 'scoped memory for node_odefunc_forward_prepared.1']
    #allocation5 [shape = 'u8[4096]{0}', space=vmem, size = 0x1000, scoped, tag = 'output window, operand 0, single buffered']
    %8 = vsyncpa [#allocation3], 0
    %9 = vsyncpa [#allocation4], 0
    // Predicated region
    $region2: #{node_odefunc_forward_prepared.1} parent=1 // pred_check
      _
    $region3: #{node_odefunc_forward_prepared.1} parent=1 // pred_check_branch
      %11 = sbr.rel (0) target = $region5
    $region4: #{node_odefunc_forward_prepared.1} parent=1 // pred_region
      _
    $region5: #{node_odefunc_forward_prepared.1} parent=1 // pred_fallthru
      _
    // Predicated region
    $region6: #{node_odefunc_forward_prepared.1} parent=1 // pred_check
      _
    $region7: #{node_odefunc_forward_prepared.1} parent=1 // pred_check_branch
      %13 = sbr.rel (0) target = $region9
    $region8: #{node_odefunc_forward_prepared.1} parent=1 // pred_region
      %15 = vsyncadd [#allocation3], 0
      %s16 = sshll.u32 %s1, 4
      %s17 = int_to_ptr.hbm [resolvable:$true] %s16
      %s18 = sshll.u32 [#allocation2], 4
      %s19 = int_to_ptr.vmem [resolvable:$true] %s18
      %24 = dma.hbm_to_vmem [thread:$0]  %s17, 2048, %s19, [#allocation3], 128, 128, 8
    $region9: #{node_odefunc_forward_prepared.1} parent=1 // pred_fallthru
      _
    // Predicated region
    $region10: #{node_odefunc_forward_prepared.1} parent=1 // pred_check
      _
    $region11: #{node_odefunc_forward_prepared.1} parent=1 // pred_check_branch
      %26 = sbr.rel (0) target = $region13
    $region12: #{node_odefunc_forward_prepared.1} parent=1 // pred_region
      _
    $region13: #{node_odefunc_forward_prepared.1} parent=1 // pred_fallthru
      _
    // Predicated region
    $region14: #{node_odefunc_forward_prepared.1} parent=1 // pred_check
      _
    $region15: #{node_odefunc_forward_prepared.1} parent=1 // pred_check_branch
      %28 = sbr.rel (0) target = $region17
    $region16: #{node_odefunc_forward_prepared.1} parent=1 // pred_region
      %30 = dma.done [#allocation3], 2048
    $region17: #{node_odefunc_forward_prepared.1} parent=1 // pred_fallthru
      _
    %v31 = vld [vmem:[%s0] sm:$0xff]
    %v32 = vld [vmem:[#allocation2] sm:$0xff]
    %v33 = vld [vmem:[#allocation2 + $0x8] sm:$0xff]
    %v34 = vld [vmem:[#allocation2 + $0x10] sm:$0xff]
    %v35 = vld [vmem:[#allocation2 + $0x18] sm:$0xff]
    %v36 = vld [vmem:[#allocation2 + $0x20] sm:$0xff]
    %v37 = vld [vmem:[#allocation2 + $0x28] sm:$0xff]
    %v38 = vld [vmem:[#allocation2 + $0x30] sm:$0xff]
    %v39 = vld [vmem:[#allocation2 + $0x38] sm:$0xff]
    %v40 = vld [vmem:[#allocation2 + $0x40] sm:$0xff]
    %v41 = vld [vmem:[#allocation2 + $0x48] sm:$0xff]
    %v42 = vld [vmem:[#allocation2 + $0x50] sm:$0xff]
    %v43 = vld [vmem:[#allocation2 + $0x58] sm:$0xff]
    %v44 = vld [vmem:[#allocation2 + $0x60] sm:$0xff]
    %v45 = vld [vmem:[#allocation2 + $0x68] sm:$0xff]
    %v46 = vld [vmem:[#allocation2 + $0x70] sm:$0xff]
    %v47 = vld [vmem:[#allocation2 + $0x78] sm:$0xff]
    %v48 = vld [vmem:[%s2] sm:$0x1]
    %v50 = vperm.slane %v48, 0
    %52 = vmatpush.msra.mxu0 %v47
    %53 = vmatpush.msra.mxu0 %v46
    %54 = vmatpush.msra.mxu0 %v45
    %55 = vmatpush.msra.mxu0 %v44
    %56 = vmatpush.msra.mxu0 %v43
    %57 = vmatpush.msra.mxu0 %v42
    %58 = vmatpush.msra.mxu0 %v41
    %59 = vmatpush.msra.mxu0 %v40
    %60 = vmatpush.msra.mxu0 %v39
    %61 = vmatpush.msra.mxu0 %v38
    %62 = vmatpush.msra.mxu0 %v37
    %63 = vmatpush.msra.mxu0 %v36
    %64 = vmatpush.msra.mxu0 %v35
    %65 = vmatpush.msra.mxu0 %v34
    %66 = vmatpush.msra.mxu0 %v33
    %67 = vmatpush.msra.mxu0 %v32
    %68 = vmatmul.f32.gmra.mxu0 %v31
    %v69 = vpop.f32.mrf.mxu0
    %v70 = vadd.f32 %v50, %v69
    %71 = vdwg.mxu0
    %v72 = vtanh.pop %v70
    %73 = vst [vmem:[#allocation5] sm:$0xff] %v72
    // Predicated region
    $region18: #{node_odefunc_forward_prepared.1} parent=1 // pred_check
      _
    $region19: #{node_odefunc_forward_prepared.1} parent=1 // pred_check_branch
      %75 = sbr.rel (0) target = $region21
    $region20: #{node_odefunc_forward_prepared.1} parent=1 // pred_region
      %77 = vsyncadd [#allocation4], 0
      %s79 = sshll.u32 [#allocation5], 4
      %s80 = int_to_ptr.vmem [resolvable:$true] %s79
      %s81 = sshll.u32 %s3, 4
      %s82 = int_to_ptr.hbm [resolvable:$true] %s81
      %84 = dma.vmem_to_hbm [thread:$0]  %s80, 128, %s82, [#allocation4]
    $region21: #{node_odefunc_forward_prepared.1} parent=1 // pred_fallthru
      _
    // Predicated region
    $region22: #{node_odefunc_forward_prepared.1} parent=1 // pred_check
      _
    $region23: #{node_odefunc_forward_prepared.1} parent=1 // pred_check_branch
      %86 = sbr.rel (0) target = $region25
    $region24: #{node_odefunc_forward_prepared.1} parent=1 // pred_region
      %88 = dma.done [#allocation4], 128
    $region25: #{node_odefunc_forward_prepared.1} parent=1 // pred_fallthru
      _
    %89 = vsyncpa [#allocation3], 1
    %90 = vsyncpa [#allocation4], 1

</llo_original>
